<compile_context>
chip_gen: v6e
topology: v6e:2x2x1
jax: 0.10.0
libtpu: 0.0.40
codegen_flags: <defaults>
</compile_context>

<pallas_src>
import functools

import jax
import jax.numpy as jnp
from jax import lax
from jax.experimental import pallas as pl
from jax.experimental.pallas import tpu as pltpu


def _stable_softplus(r):
    # softplus(r) = log1p(exp(r)), computed without overflow for large r.
    return jnp.maximum(r, 0.0) + jnp.log1p(jnp.exp(-jnp.abs(r)))


def bayesian_linear_kernel(x_ref, wmu_ref, wrho_ref, weps_ref, bias_ref,
                           o_ref, acc_ref, *, mxu_dtype):
    k = pl.program_id(2)
    nk = pl.num_programs(2)

    # Reparameterized weight sample for this [tn, tk] tile; sampling math in
    # f32 regardless of the HBM storage dtype of mu/rho/eps.
    w_sigma = _stable_softplus(wrho_ref[...].astype(jnp.float32))
    weight = (wmu_ref[...].astype(jnp.float32)
              + w_sigma * weps_ref[...].astype(jnp.float32))          # [tn, tk]

    # NT contraction: x:[tm,tk] with weight:[tn,tk] over their last dims
    # -> [tm,tn] (== x @ weight.T).  MXU consumes the weight in its native
    # [out, in] layout, no in-kernel transpose.  Operands in bf16 (default),
    # accumulation in f32.
    partial = lax.dot_general(
        x_ref[...].astype(mxu_dtype), weight.astype(mxu_dtype),
        dimension_numbers=(((1,), (1,)), ((), ())),
        preferred_element_type=jnp.float32)

    @pl.when(k == 0)
    def _():
        acc_ref[...] = jnp.zeros_like(acc_ref)

    @pl.when(k < nk - 1)
    def _():
        acc_ref[...] += partial

    @pl.when(k == nk - 1)
    def _():
        # Final result written directly: skips one (tm,tn) f32 accumulator
        # store+reload per output block.
        o_ref[...] = (acc_ref[...] + partial
                      + bias_ref[...].astype(jnp.float32)).astype(o_ref.dtype)


def _round_up(v, m):
    return ((v + m - 1) // m) * m


def _vmem_capacity_bytes():
    """Per-core VMEM capacity; conservative v7x default if the query fails."""
    try:
        info = pltpu.get_tpu_info()
        for attr in ("vmem_capacity_bytes", "vmem_size_bytes", "vmem_bytes"):
            v = getattr(info, attr, None)
            if v:
                return int(v)
    except Exception:
        pass
    return 64 << 20


def _pick_tiles(B_pad, N_pad, K_pad, vmem_cap, itemsize=4):
    """Largest (tm, tn, tk) whose double-buffered working set fits ~70% of VMEM."""
    tm = min(256, B_pad)
    budget = int(vmem_cap * 0.70)
    for tn_c, tk_c in ((1024, 1024), (1024, 512), (512, 512),
                       (512, 256), (256, 256), (128, 128)):
        tn = min(tn_c, N_pad)
        tk = min(tk_c, K_pad)
        need = itemsize * (2 * (tm * tk + 3 * tn * tk + tn + tm * tn)
                           + tm * tn) + (4 << 20)
        if need <= budget:
            return tm, tn, tk
    return tm, min(128, N_pad), min(128, K_pad)


@functools.partial(
    jax.jit,
    static_argnames=("tm", "tn", "tk", "use_bf16_mxu", "weights_in_bf16"))
def bayesian_linear(x, weight_mu, weight_rho, weight_eps,
                    bias_mu, bias_rho, bias_eps,
                    *, tm=None, tn=None, tk=None,
                    use_bf16_mxu=True, weights_in_bf16=False):
    """x: [B, in], weight_*: [out, in], bias_*: [out] -> [B, out]."""
    B, K = x.shape
    N = weight_mu.shape[0]

    # Hardware-friendly padded extents: lane dims multiples of 128, batch of 8.
    B_pad = _round_up(B, 8)
    K_pad = _round_up(K, 128)
    N_pad = _round_up(N, 128)

    vmem_cap = _vmem_capacity_bytes()
    tm0, tn0, tk0 = _pick_tiles(B_pad, N_pad, K_pad, vmem_cap)
    user_tn = tn is not None
    tm = min(tm, B_pad) if tm is not None else tm0
    tn = min(tn, N_pad) if tn is not None else tn0
    tk = min(tk, K_pad) if tk is not None else tk0

    # Megacore occupancy (v7x has 2 TensorCores sharded over "parallel" grid
    # axes): if the parallel portion of the grid would be a single block, halve
    # tn so both cores get work.  Near-free on single-core generations.
    if (not user_tn) and (B_pad // tm) * pl.cdiv(N_pad, tn) < 2 and N_pad >= 256:
        tn = _round_up(N_pad // 2, 128)

    # Make padded extents tile multiples.
    B_pad = _round_up(B_pad, tm)
    K_pad = _round_up(K_pad, tk)
    N_pad = _round_up(N_pad, tn)

    def maybe_pad2(a, rows, cols, dtype=None):
        if dtype is not None and a.dtype != dtype:
            a = a.astype(dtype)            # one-time cast fused with padding
        if a.shape == (rows, cols):
            return a                       # skip the HBM round-trip if aligned
        return jnp.pad(a, ((0, rows - a.shape[0]), (0, cols - a.shape[1])))

    w_dtype = jnp.bfloat16 if weights_in_bf16 else weight_mu.dtype
    xp = maybe_pad2(x, B_pad, K_pad)
    wmu = maybe_pad2(weight_mu, N_pad, K_pad, w_dtype)
    wrho = maybe_pad2(weight_rho, N_pad, K_pad, w_dtype)
    weps = maybe_pad2(weight_eps, N_pad, K_pad, w_dtype)
    # Padded mu/eps are zero -> sampled padded weights are exactly 0, so padded
    # K columns / N rows contribute nothing to the valid output region.

    # Bias sample is only N elements: compute it in XLA (free) and stream a
    # single [1, N_pad] f32 array instead of three.
    bias = bias_mu.astype(jnp.float32) + jax.nn.softplus(
        bias_rho.astype(jnp.float32)) * bias_eps.astype(jnp.float32)
    bias = jnp.pad(bias, (0, N_pad - N)).reshape(1, N_pad)

    grid = (B_pad // tm, N_pad // tn, K_pad // tk)

    x_spec = pl.BlockSpec((tm, tk), lambda b, n, k: (b, k))
    w_spec = pl.BlockSpec((tn, tk), lambda b, n, k: (n, k))
    b_spec = pl.BlockSpec((1, tn), lambda b, n, k: (0, n))
    o_spec = pl.BlockSpec((tm, tn), lambda b, n, k: (b, n))

    # VMEM budget from actual tile bytes (double-buffered operands + f32
    # accumulator + slack), capped below the queried per-core capacity.
    w_item = 2 if weights_in_bf16 else 4
    tile_bytes = (2 * (4 * tm * tk + 3 * w_item * tn * tk + 4 * tn + 4 * tm * tn)
                  + 4 * tm * tn)
    vmem_limit = int(min(max(tile_bytes + (8 << 20), 16 << 20),
                         max(vmem_cap - (4 << 20), 16 << 20)))

    mxu_dtype = jnp.bfloat16 if use_bf16_mxu else jnp.float32
    kernel = functools.partial(bayesian_linear_kernel, mxu_dtype=mxu_dtype)

    out_padded = pl.pallas_call(
        kernel,
        out_shape=jax.ShapeDtypeStruct((B_pad, N_pad), x.dtype),
        grid_spec=pltpu.PrefetchScalarGridSpec(
            num_scalar_prefetch=0,
            grid=grid,
            in_specs=[x_spec, w_spec, w_spec, w_spec, b_spec],
            out_specs=o_spec,
            scratch_shapes=[pltpu.VMEM((tm, tn), jnp.float32)],
        ),
        compiler_params=pltpu.CompilerParams(
            dimension_semantics=("parallel", "parallel", "arbitrary"),
            vmem_limit_bytes=vmem_limit,
        ),
    )(xp, wmu, wrho, weps, bias)

    return out_padded[:B, :N]


def reference(x, weight_mu, weight_rho, weight_eps, bias_mu, bias_rho, bias_eps,
              mxu_dtype=jnp.float32):
    w = weight_mu + jax.nn.softplus(weight_rho) * weight_eps
    b = bias_mu + jax.nn.softplus(bias_rho) * bias_eps
    y = lax.dot_general(x.astype(mxu_dtype), w.astype(mxu_dtype),
                        dimension_numbers=(((1,), (1,)), ((), ())),
                        preferred_element_type=jnp.float32)
    return y + b


def _make_inputs(key, B, in_features, out_features):
    k_x, k_wmu, k_weps, k_beps = jax.random.split(key, 4)
    # reset_parameters(): xavier_normal_ for weight_mu, -3 for rho, zeros bias_mu.
    xavier_std = (2.0 / (in_features + out_features)) ** 0.5
    weight_mu = xavier_std * jax.random.normal(
        k_wmu, (out_features, in_features), dtype=jnp.float32)
    weight_rho = jnp.full((out_features, in_features), -3.0, dtype=jnp.float32)
    bias_mu = jnp.zeros((out_features,), dtype=jnp.float32)
    bias_rho = jnp.full((out_features,), -3.0, dtype=jnp.float32)
    # Deterministic "random" noise for the reparameterization trick.
    weight_eps = jax.random.normal(k_weps, (out_features, in_features),
                                   dtype=jnp.float32)
    bias_eps = jax.random.normal(k_beps, (out_features,), dtype=jnp.float32)
    x = jax.random.normal(k_x, (B, in_features), dtype=jnp.float32)
    return x, weight_mu, weight_rho, weight_eps, bias_mu, bias_rho, bias_eps


if __name__ == "__main__":
    key = jax.random.PRNGKey(0)
    k1, k2 = jax.random.split(key)

    # Case 1: module-like small shapes, exact-f32 MXU path vs exact reference.
    args1 = _make_inputs(k1, B=8, in_features=32, out_features=16)
    out1 = jax.block_until_ready(bayesian_linear(*args1, use_bf16_mxu=False))
    ref1 = reference(*args1)
    assert out1.shape == (8, 16)
    assert jnp.allclose(out1, ref1, atol=1e-5, rtol=1e-5)

    # Case 2: multi-step (N, K) grid with explicit small tiles, default bf16
    # MXU path, compared against a bf16-operand reference (same MXU numerics).
    args2 = _make_inputs(k2, B=8, in_features=300, out_features=200)
    out2 = jax.block_until_ready(
        bayesian_linear(*args2, tm=8, tn=128, tk=128))
    ref2_bf16 = reference(*args2, mxu_dtype=jnp.bfloat16)
    ref2_f32 = reference(*args2)
    assert out2.shape == (8, 200)
    assert jnp.allclose(out2, ref2_bf16, atol=2e-3, rtol=2e-3)

    # Case 3: auto tiling + megacore split + bf16 weight streams in HBM;
    # loose check against the exact f32 reference (bf16 params perturb ~0.5%).
    out3 = jax.block_until_ready(
        bayesian_linear(*args2, weights_in_bf16=True))
    assert out3.shape == (8, 200)
    assert jnp.allclose(out3, ref2_f32, atol=1e-1, rtol=5e-2)

    print("KERNEL_OK")
</pallas_src>

<mosaic_0001>
module attributes {stable_mosaic.version = 11 : i64} {
  func.func @bayesian_linear_kernel(%arg0: i32, %arg1: i32, %arg2: i32, %arg3: memref<8x128xf32, #tpu.memory_space<vmem>>, %arg4: memref<128x128xf32, #tpu.memory_space<vmem>>, %arg5: memref<128x128xf32, #tpu.memory_space<vmem>>, %arg6: memref<128x128xf32, #tpu.memory_space<vmem>>, %arg7: memref<1x128xf32, #tpu.memory_space<vmem>>, %arg8: memref<8x128xf32, #tpu.memory_space<vmem>>, %arg9: memref<8x128xf32, #tpu.memory_space<vmem>>) attributes {dimension_semantics = [#tpu.dimension_semantics<parallel>, #tpu.dimension_semantics<parallel>, #tpu.dimension_semantics<arbitrary>], iteration_bounds = array<i64: 1, 1, 1>, scalar_prefetch = 0 : i64, scratch_operands = 1 : i64, tpu.core_type = #tpu.core_type<tc>, window_params = [{transform_indices = @transform_0, window_bounds = array<i64: 8, 128>}, {transform_indices = @transform_1, window_bounds = array<i64: 128, 128>}, {transform_indices = @transform_2, window_bounds = array<i64: 128, 128>}, {transform_indices = @transform_3, window_bounds = array<i64: 128, 128>}, {transform_indices = @transform_4, window_bounds = array<i64: 1, 128>}, {transform_indices = @transform_5, window_bounds = array<i64: 8, 128>}]} {
    %c0 = arith.constant 0 : index
    %c0_0 = arith.constant 0 : index
    %0 = vector.load %arg5[%c0, %c0_0] : memref<128x128xf32, #tpu.memory_space<vmem>>, vector<128x128xf32>
    %cst = arith.constant 0.000000e+00 : f32
    %1 = vector.broadcast %cst : f32 to vector<128x128xf32>
    %2 = arith.maximumf %0, %1 : vector<128x128xf32>
    %3 = math.absf %0 : vector<128x128xf32>
    %cst_1 = arith.constant 0.000000e+00 : f32
    %4 = vector.broadcast %cst_1 : f32 to vector<128x128xf32>
    %5 = arith.subf %4, %3 : vector<128x128xf32>
    %6 = math.exp %5 : vector<128x128xf32>
    %7 = math.log1p %6 : vector<128x128xf32>
    %8 = arith.addf %2, %7 : vector<128x128xf32>
    %c0_2 = arith.constant 0 : index
    %c0_3 = arith.constant 0 : index
    %9 = vector.load %arg4[%c0_2, %c0_3] : memref<128x128xf32, #tpu.memory_space<vmem>>, vector<128x128xf32>
    %c0_4 = arith.constant 0 : index
    %c0_5 = arith.constant 0 : index
    %10 = vector.load %arg6[%c0_4, %c0_5] : memref<128x128xf32, #tpu.memory_space<vmem>>, vector<128x128xf32>
    %11 = arith.mulf %8, %10 : vector<128x128xf32>
    %12 = arith.addf %9, %11 : vector<128x128xf32>
    %c0_6 = arith.constant 0 : index
    %c0_7 = arith.constant 0 : index
    %13 = vector.load %arg3[%c0_6, %c0_7] : memref<8x128xf32, #tpu.memory_space<vmem>>, vector<8x128xf32>
    %cst_8 = arith.constant dense<0.000000e+00> : vector<8x128xf32>
    %14 = tpu.matmul %13, %12, %cst_8 {dimension_numbers = #tpu.dot_dimension_numbers<[1], [1], [0], [0], [0, 0, 1, 0], [], []>} : vector<8x128xf32>, vector<128x128xf32>, vector<8x128xf32> -> vector<8x128xf32>
    %c0_i32 = arith.constant 0 : i32
    %15 = arith.cmpi eq, %arg2, %c0_i32 : i32
    %16 = arith.extui %15 : i1 to i32
    %c0_i32_9 = arith.constant 0 : i32
    %17 = arith.cmpi ne, %16, %c0_i32_9 : i32
    scf.if %17 {
      %cst_14 = arith.constant 0.000000e+00 : f32
      %24 = vector.broadcast %cst_14 : f32 to vector<8x128xf32>
      %c0_15 = arith.constant 0 : index
      %c0_16 = arith.constant 0 : index
      %25 = vector.load %arg9[%c0_15, %c0_16] : memref<8x128xf32, #tpu.memory_space<vmem>>, vector<8x128xf32>
      tpu.vector_store %arg9[%c0_15, %c0_16], %24 {strides = array<i32>} : memref<8x128xf32, #tpu.memory_space<vmem>>, vector<8x128xf32>,
    } else {
    }
    %c0_i32_10 = arith.constant 0 : i32
    %18 = arith.cmpi slt, %arg2, %c0_i32_10 : i32
    %19 = arith.extui %18 : i1 to i32
    %c0_i32_11 = arith.constant 0 : i32
    %20 = arith.cmpi ne, %19, %c0_i32_11 : i32
    scf.if %20 {
      %c0_14 = arith.constant 0 : index
      %c0_15 = arith.constant 0 : index
      %24 = vector.load %arg9[%c0_14, %c0_15] : memref<8x128xf32, #tpu.memory_space<vmem>>, vector<8x128xf32>
      %25 = arith.addf %24, %14 : vector<8x128xf32>
      %c0_16 = arith.constant 0 : index
      %c0_17 = arith.constant 0 : index
      %26 = vector.load %arg9[%c0_16, %c0_17] : memref<8x128xf32, #tpu.memory_space<vmem>>, vector<8x128xf32>
      tpu.vector_store %arg9[%c0_16, %c0_17], %25 {strides = array<i32>} : memref<8x128xf32, #tpu.memory_space<vmem>>, vector<8x128xf32>,
    } else {
    }
    %c0_i32_12 = arith.constant 0 : i32
    %21 = arith.cmpi eq, %arg2, %c0_i32_12 : i32
    %22 = arith.extui %21 : i1 to i32
    %c0_i32_13 = arith.constant 0 : i32
    %23 = arith.cmpi ne, %22, %c0_i32_13 : i32
    scf.if %23 {
      %c0_14 = arith.constant 0 : index
      %c0_15 = arith.constant 0 : index
      %24 = vector.load %arg9[%c0_14, %c0_15] : memref<8x128xf32, #tpu.memory_space<vmem>>, vector<8x128xf32>
      %25 = arith.addf %24, %14 : vector<8x128xf32>
      %c0_16 = arith.constant 0 : index
      %c0_17 = arith.constant 0 : index
      %26 = vector.load %arg7[%c0_16, %c0_17] : memref<1x128xf32, #tpu.memory_space<vmem>>, vector<1x128xf32>
      %27 = vector.broadcast %26 : vector<1x128xf32> to vector<8x128xf32>
      %28 = arith.addf %25, %27 : vector<8x128xf32>
      %c0_18 = arith.constant 0 : index
      %c0_19 = arith.constant 0 : index
      %29 = vector.load %arg8[%c0_18, %c0_19] : memref<8x128xf32, #tpu.memory_space<vmem>>, vector<8x128xf32>
      tpu.vector_store %arg8[%c0_18, %c0_19], %28 {strides = array<i32>} : memref<8x128xf32, #tpu.memory_space<vmem>>, vector<8x128xf32>,
    } else {
    }
    return
  }
  func.func @transform_0(%arg0: i32, %arg1: i32, %arg2: i32) -> (i32, i32) {
    %c0_i32 = arith.constant 0 : i32
    return %arg0, %arg2 : i32, i32
  }
  func.func @transform_1(%arg0: i32, %arg1: i32, %arg2: i32) -> (i32, i32) {
    %c0_i32 = arith.constant 0 : i32
    return %arg1, %arg2 : i32, i32
  }
  func.func @transform_2(%arg0: i32, %arg1: i32, %arg2: i32) -> (i32, i32) {
    %c0_i32 = arith.constant 0 : i32
    return %arg1, %arg2 : i32, i32
  }
  func.func @transform_3(%arg0: i32, %arg1: i32, %arg2: i32) -> (i32, i32) {
    %c0_i32 = arith.constant 0 : i32
    return %arg1, %arg2 : i32, i32
  }
  func.func @transform_4(%arg0: i32, %arg1: i32, %arg2: i32) -> (i32, i32) {
    %c0_i32 = arith.constant 0 : i32
    %c0_i32_0 = arith.constant 0 : i32
    return %c0_i32, %arg1 : i32, i32
  }
  func.func @transform_5(%arg0: i32, %arg1: i32, %arg2: i32) -> (i32, i32) {
    %c0_i32 = arith.constant 0 : i32
    return %arg0, %arg1 : i32, i32
  }
}

</mosaic_0001>

<llo_original>
// kernel: bayesian_linear.1
$region0: #{bayesian_linear.1}
  #allocation0 [shape = 'u32[]', space=smem, size = 0x4, offset = 0x4, fixed_abs, tag = 'smem constant byte address 0x4 - core index']
  #allocation1 [shape = 'u32[144,128]{1,0:T(1,128)}', space=vmem, size = 0x12000, scoped, tag = 'internal scratch']
  #allocation2 [shape = 'f32[8,128]{1,0:T(8,128)}', space=vmem, size = 0x1000, scoped, tag = 'scratch operand']
  %s0 = inlined_call_operand.vmem [shape: f32[8,128], index: 0, kind: input, shape index: {}]
  %s1 = inlined_call_operand.vmem [shape: f32[128,128], index: 1, kind: input, shape index: {}]
  %s2 = inlined_call_operand.vmem [shape: f32[128,128], index: 2, kind: input, shape index: {}]
  %s3 = inlined_call_operand.vmem [shape: f32[128,128], index: 3, kind: input, shape index: {}]
  %s4 = inlined_call_operand.vmem [shape: f32[1,128], index: 4, kind: input, shape index: {}]
  %s5 = inlined_call_operand.hbm [shape: f32[8,128], index: 5, kind: output, shape index: {}]
  %s6 = sld [smem:[#allocation0]]
  $region42: #{bayesian_linear.1} parent=0
    _
  %s8 = ssub.s32 1, %s6
  %s9 = scalar_select 0, %s8, %s6
  $region1: #{bayesian_linear.1} parent=0
    #allocation3 [shape = 'u8[4096]{0}', space=vmem, size = 0x1000, scoped, tag = 'output window, operand 0, single buffered']
    #allocation4 [shape = 's32[1]{0}', space=sflag, size = 0x4, scoped, tag = 'scoped memory for bayesian_linear.1']
    %10 = vsyncpa [#allocation4], 0
    // Predicated region
    $region2: #{bayesian_linear.1} parent=1 // pred_check
      _
    $region3: #{bayesian_linear.1} parent=1 // pred_check_branch
      %12 = sbr.rel (0) target = $region5
    $region4: #{bayesian_linear.1} parent=1 // pred_region
      _
    $region5: #{bayesian_linear.1} parent=1 // pred_fallthru
      _
    // Predicated region
    $region6: #{bayesian_linear.1} parent=1 // pred_check
      _
    $region7: #{bayesian_linear.1} parent=1 // pred_check_branch
      %14 = sbr.rel (0) target = $region9
    $region8: #{bayesian_linear.1} parent=1 // pred_region
      _
    $region9: #{bayesian_linear.1} parent=1 // pred_fallthru
      _
    // Predicated region
    $region10: #{bayesian_linear.1} parent=1 // pred_check
      _
    $region11: #{bayesian_linear.1} parent=1 // pred_check_branch
      %16 = sbr.rel (0) target = $region13
    $region12: #{bayesian_linear.1} parent=1 // pred_region
      _
    $region13: #{bayesian_linear.1} parent=1 // pred_fallthru
      _
    // Predicated region
    $region14: #{bayesian_linear.1} parent=1 // pred_check
      _
    $region15: #{bayesian_linear.1} parent=1 // pred_check_branch
      %18 = sbr.rel (0) target = $region17
    $region16: #{bayesian_linear.1} parent=1 // pred_region
      _
    $region17: #{bayesian_linear.1} parent=1 // pred_fallthru
      _
    // Predicated region
    $region18: #{bayesian_linear.1} parent=1 // pred_check
      _
    $region19: #{bayesian_linear.1} parent=1 // pred_check_branch
      %20 = sbr.rel (0) target = $region21
    $region20: #{bayesian_linear.1} parent=1 // pred_region
      _
    $region21: #{bayesian_linear.1} parent=1 // pred_fallthru
      _
    %v21 = vld [vmem:[%s2] sm:$0xff]
    %v22 = vld [vmem:[%s2 + $0x8] sm:$0xff]
    %v23 = vld [vmem:[%s2 + $0x10] sm:$0xff]
    %v24 = vld [vmem:[%s2 + $0x18] sm:$0xff]
    %v25 = vld [vmem:[%s2 + $0x20] sm:$0xff]
    %v26 = vld [vmem:[%s2 + $0x28] sm:$0xff]
    %v27 = vld [vmem:[%s2 + $0x30] sm:$0xff]
    %v28 = vld [vmem:[%s2 + $0x38] sm:$0xff]
    %v29 = vld [vmem:[%s2 + $0x40] sm:$0xff]
    %v30 = vld [vmem:[%s2 + $0x48] sm:$0xff]
    %v31 = vld [vmem:[%s2 + $0x50] sm:$0xff]
    %v32 = vld [vmem:[%s2 + $0x58] sm:$0xff]
    %v33 = vld [vmem:[%s2 + $0x60] sm:$0xff]
    %v34 = vld [vmem:[%s2 + $0x68] sm:$0xff]
    %v35 = vld [vmem:[%s2 + $0x70] sm:$0xff]
    %v36 = vld [vmem:[%s2 + $0x78] sm:$0xff]
    %v37 = vmax.f32 %v21, 0.0
    %v38 = vmax.f32 %v22, 0.0
    %v39 = vmax.f32 %v23, 0.0
    %v40 = vmax.f32 %v24, 0.0
    %v41 = vmax.f32 %v25, 0.0
    %v42 = vmax.f32 %v26, 0.0
    %v43 = vmax.f32 %v27, 0.0
    %v44 = vmax.f32 %v28, 0.0
    %v45 = vmax.f32 %v29, 0.0
    %v46 = vmax.f32 %v30, 0.0
    %v47 = vmax.f32 %v31, 0.0
    %v48 = vmax.f32 %v32, 0.0
    %v49 = vmax.f32 %v33, 0.0
    %v50 = vmax.f32 %v34, 0.0
    %v51 = vmax.f32 %v35, 0.0
    %v52 = vmax.f32 %v36, 0.0
    %v53 = vand.u32 2147483647, %v21
    %v54 = vand.u32 2147483647, %v22
    %v55 = vand.u32 2147483647, %v23
    %v56 = vand.u32 2147483647, %v24
    %v57 = vand.u32 2147483647, %v25
    %v58 = vand.u32 2147483647, %v26
    %v59 = vand.u32 2147483647, %v27
    %v60 = vand.u32 2147483647, %v28
    %v61 = vand.u32 2147483647, %v29
    %v62 = vand.u32 2147483647, %v30
    %v63 = vand.u32 2147483647, %v31
    %v64 = vand.u32 2147483647, %v32
    %v65 = vand.u32 2147483647, %v33
    %v66 = vand.u32 2147483647, %v34
    %v67 = vand.u32 2147483647, %v35
    %v68 = vand.u32 2147483647, %v36
    %v69 = vsub.f32 0.0, %v53
    %v70 = vsub.f32 0.0, %v54
    %v71 = vsub.f32 0.0, %v55
    %v72 = vsub.f32 0.0, %v56
    %v73 = vsub.f32 0.0, %v57
    %v74 = vsub.f32 0.0, %v58
    %v75 = vsub.f32 0.0, %v59
    %v76 = vsub.f32 0.0, %v60
    %v77 = vsub.f32 0.0, %v61
    %v78 = vsub.f32 0.0, %v62
    %v79 = vsub.f32 0.0, %v63
    %v80 = vsub.f32 0.0, %v64
    %v81 = vsub.f32 0.0, %v65
    %v82 = vsub.f32 0.0, %v66
    %v83 = vsub.f32 0.0, %v67
    %v84 = vsub.f32 0.0, %v68
    %v85 = vmul.f32 %v69, 1.442695
    %v86 = vpow.pop %v85
    %v87 = vmul.f32 %v70, 1.442695
    %v88 = vpow.pop %v87
    %v89 = vmul.f32 %v71, 1.442695
    %v90 = vpow.pop %v89
    %v91 = vmul.f32 %v72, 1.442695
    %v92 = vpow.pop %v91
    %v93 = vmul.f32 %v73, 1.442695
    %v94 = vpow.pop %v93
    %v95 = vmul.f32 %v74, 1.442695
    %v96 = vpow.pop %v95
    %v97 = vmul.f32 %v75, 1.442695
    %v98 = vpow.pop %v97
    %v99 = vmul.f32 %v76, 1.442695
    %v100 = vpow.pop %v99
    %v101 = vmul.f32 %v77, 1.442695
    %v102 = vpow.pop %v101
    %v103 = vmul.f32 %v78, 1.442695
    %v104 = vpow.pop %v103
    %v105 = vmul.f32 %v79, 1.442695
    %v106 = vpow.pop %v105
    %v107 = vmul.f32 %v80, 1.442695
    %v108 = vpow.pop %v107
    %v109 = vmul.f32 %v81, 1.442695
    %v110 = vpow.pop %v109
    %v111 = vmul.f32 %v82, 1.442695
    %v112 = vpow.pop %v111
    %v113 = vmul.f32 %v83, 1.442695
    %v114 = vpow.pop %v113
    %v115 = vmul.f32 %v84, 1.442695
    %v116 = vpow.pop %v115
    %v117 = vadd.f32 %v86, 1.0
    %v118 = vlog2.pop %v117
    %v119 = vmul.f32 %v118, 0.6931472
    %v120 = vmul.f32 -0.5, %v86
    %v121 = vadd.f32 %v120, 1.0
    %v122 = vmul.f32 %v121, %v86
    %v123 = vand.u32 2147483647, %v86
    %vm124 = vcmp.lt.f32.partialorder %v123, 0.0004427343
    %v125 = vsel %vm124, %v122, %v119
    %v126 = vadd.f32 %v88, 1.0
    %v127 = vlog2.pop %v126
    %v128 = vmul.f32 %v127, 0.6931472
    %v129 = vmul.f32 -0.5, %v88
    %v130 = vadd.f32 %v129, 1.0
    %v131 = vmul.f32 %v130, %v88
    %v132 = vand.u32 2147483647, %v88
    %vm133 = vcmp.lt.f32.partialorder %v132, 0.0004427343
    %v134 = vsel %vm133, %v131, %v128
    %v135 = vadd.f32 %v90, 1.0
    %v136 = vlog2.pop %v135
    %v137 = vmul.f32 %v136, 0.6931472
    %v138 = vmul.f32 -0.5, %v90
    %v139 = vadd.f32 %v138, 1.0
    %v140 = vmul.f32 %v139, %v90
    %v141 = vand.u32 2147483647, %v90
    %vm142 = vcmp.lt.f32.partialorder %v141, 0.0004427343
    %v143 = vsel %vm142, %v140, %v137
    %v144 = vadd.f32 %v92, 1.0
    %v145 = vlog2.pop %v144
    %v146 = vmul.f32 %v145, 0.6931472
    %v147 = vmul.f32 -0.5, %v92
    %v148 = vadd.f32 %v147, 1.0
    %v149 = vmul.f32 %v148, %v92
    %v150 = vand.u32 2147483647, %v92
    %vm151 = vcmp.lt.f32.partialorder %v150, 0.0004427343
    %v152 = vsel %vm151, %v149, %v146
    %v153 = vadd.f32 %v94, 1.0
    %v154 = vlog2.pop %v153
    %v155 = vmul.f32 %v154, 0.6931472
    %v156 = vmul.f32 -0.5, %v94
    %v157 = vadd.f32 %v156, 1.0
    %v158 = vmul.f32 %v157, %v94
    %v159 = vand.u32 2147483647, %v94
    %vm160 = vcmp.lt.f32.partialorder %v159, 0.0004427343
    %v161 = vsel %vm160, %v158, %v155
    %v162 = vadd.f32 %v96, 1.0
    %v163 = vlog2.pop %v162
    %v164 = vmul.f32 %v163, 0.6931472
    %v165 = vmul.f32 -0.5, %v96
    %v166 = vadd.f32 %v165, 1.0
    %v167 = vmul.f32 %v166, %v96
    %v168 = vand.u32 2147483647, %v96
    %vm169 = vcmp.lt.f32.partialorder %v168, 0.0004427343
    %v170 = vsel %vm169, %v167, %v164
    %v171 = vadd.f32 %v98, 1.0
    %v172 = vlog2.pop %v171
    %v173 = vmul.f32 %v172, 0.6931472
    %v174 = vmul.f32 -0.5, %v98
    %v175 = vadd.f32 %v174, 1.0
    %v176 = vmul.f32 %v175, %v98
    %v177 = vand.u32 2147483647, %v98
    %vm178 = vcmp.lt.f32.partialorder %v177, 0.0004427343
    %v179 = vsel %vm178, %v176, %v173
    %v180 = vadd.f32 %v100, 1.0
    %v181 = vlog2.pop %v180
    %v182 = vmul.f32 %v181, 0.6931472
    %v183 = vmul.f32 -0.5, %v100
    %v184 = vadd.f32 %v183, 1.0
    %v185 = vmul.f32 %v184, %v100
    %v186 = vand.u32 2147483647, %v100
    %vm187 = vcmp.lt.f32.partialorder %v186, 0.0004427343
    %v188 = vsel %vm187, %v185, %v182
    %v189 = vadd.f32 %v102, 1.0
    %v190 = vlog2.pop %v189
    %v191 = vmul.f32 %v190, 0.6931472
    %v192 = vmul.f32 -0.5, %v102
    %v193 = vadd.f32 %v192, 1.0
    %v194 = vmul.f32 %v193, %v102
    %v195 = vand.u32 2147483647, %v102
    %vm196 = vcmp.lt.f32.partialorder %v195, 0.0004427343
    %v197 = vsel %vm196, %v194, %v191
    %v198 = vadd.f32 %v104, 1.0
    %v199 = vlog2.pop %v198
    %v200 = vmul.f32 %v199, 0.6931472
    %v201 = vmul.f32 -0.5, %v104
    %v202 = vadd.f32 %v201, 1.0
    %v203 = vmul.f32 %v202, %v104
    %v204 = vand.u32 2147483647, %v104
    %vm205 = vcmp.lt.f32.partialorder %v204, 0.0004427343
    %v206 = vsel %vm205, %v203, %v200
    %v207 = vadd.f32 %v106, 1.0
    %v208 = vlog2.pop %v207
    %v209 = vmul.f32 %v208, 0.6931472
    %v210 = vmul.f32 -0.5, %v106
    %v211 = vadd.f32 %v210, 1.0
    %v212 = vmul.f32 %v211, %v106
    %v213 = vand.u32 2147483647, %v106
    %vm214 = vcmp.lt.f32.partialorder %v213, 0.0004427343
    %v215 = vsel %vm214, %v212, %v209
    %v216 = vadd.f32 %v108, 1.0
    %v217 = vlog2.pop %v216
    %v218 = vmul.f32 %v217, 0.6931472
    %v219 = vmul.f32 -0.5, %v108
    %v220 = vadd.f32 %v219, 1.0
    %v221 = vmul.f32 %v220, %v108
    %v222 = vand.u32 2147483647, %v108
    %vm223 = vcmp.lt.f32.partialorder %v222, 0.0004427343
    %v224 = vsel %vm223, %v221, %v218
    %v225 = vadd.f32 %v110, 1.0
    %v226 = vlog2.pop %v225
    %v227 = vmul.f32 %v226, 0.6931472
    %v228 = vmul.f32 -0.5, %v110
    %v229 = vadd.f32 %v228, 1.0
    %v230 = vmul.f32 %v229, %v110
    %v231 = vand.u32 2147483647, %v110
    %vm232 = vcmp.lt.f32.partialorder %v231, 0.0004427343
    %v233 = vsel %vm232, %v230, %v227
    %v234 = vadd.f32 %v112, 1.0
    %v235 = vlog2.pop %v234
    %v236 = vmul.f32 %v235, 0.6931472
    %v237 = vmul.f32 -0.5, %v112
    %v238 = vadd.f32 %v237, 1.0
    %v239 = vmul.f32 %v238, %v112
    %v240 = vand.u32 2147483647, %v112
    %vm241 = vcmp.lt.f32.partialorder %v240, 0.0004427343
    %v242 = vsel %vm241, %v239, %v236
    %v243 = vadd.f32 %v114, 1.0
    %v244 = vlog2.pop %v243
    %v245 = vmul.f32 %v244, 0.6931472
    %v246 = vmul.f32 -0.5, %v114
    %v247 = vadd.f32 %v246, 1.0
    %v248 = vmul.f32 %v247, %v114
    %v249 = vand.u32 2147483647, %v114
    %vm250 = vcmp.lt.f32.partialorder %v249, 0.0004427343
    %v251 = vsel %vm250, %v248, %v245
    %v252 = vadd.f32 %v116, 1.0
    %v253 = vlog2.pop %v252
    %v254 = vmul.f32 %v253, 0.6931472
    %v255 = vmul.f32 -0.5, %v116
    %v256 = vadd.f32 %v255, 1.0
    %v257 = vmul.f32 %v256, %v116
    %v258 = vand.u32 2147483647, %v116
    %vm259 = vcmp.lt.f32.partialorder %v258, 0.0004427343
    %v260 = vsel %vm259, %v257, %v254
    %v261 = vadd.f32 %v37, %v125
    %v262 = vadd.f32 %v38, %v134
    %v263 = vadd.f32 %v39, %v143
    %v264 = vadd.f32 %v40, %v152
    %v265 = vadd.f32 %v41, %v161
    %v266 = vadd.f32 %v42, %v170
    %v267 = vadd.f32 %v43, %v179
    %v268 = vadd.f32 %v44, %v188
    %v269 = vadd.f32 %v45, %v197
    %v270 = vadd.f32 %v46, %v206
    %v271 = vadd.f32 %v47, %v215
    %v272 = vadd.f32 %v48, %v224
    %v273 = vadd.f32 %v49, %v233
    %v274 = vadd.f32 %v50, %v242
    %v275 = vadd.f32 %v51, %v251
    %v276 = vadd.f32 %v52, %v260
    %v277 = vld [vmem:[%s1] sm:$0xff]
    %v278 = vld [vmem:[%s1 + $0x8] sm:$0xff]
    %v279 = vld [vmem:[%s1 + $0x10] sm:$0xff]
    %v280 = vld [vmem:[%s1 + $0x18] sm:$0xff]
    %v281 = vld [vmem:[%s1 + $0x20] sm:$0xff]
    %v282 = vld [vmem:[%s1 + $0x28] sm:$0xff]
    %v283 = vld [vmem:[%s1 + $0x30] sm:$0xff]
    %v284 = vld [vmem:[%s1 + $0x38] sm:$0xff]
    %v285 = vld [vmem:[%s1 + $0x40] sm:$0xff]
    %v286 = vld [vmem:[%s1 + $0x48] sm:$0xff]
    %v287 = vld [vmem:[%s1 + $0x50] sm:$0xff]
    %v288 = vld [vmem:[%s1 + $0x58] sm:$0xff]
    %v289 = vld [vmem:[%s1 + $0x60] sm:$0xff]
    %v290 = vld [vmem:[%s1 + $0x68] sm:$0xff]
    %v291 = vld [vmem:[%s1 + $0x70] sm:$0xff]
    %v292 = vld [vmem:[%s1 + $0x78] sm:$0xff]
    %v293 = vld [vmem:[%s3] sm:$0xff]
    %v294 = vld [vmem:[%s3 + $0x8] sm:$0xff]
    %v295 = vld [vmem:[%s3 + $0x10] sm:$0xff]
    %v296 = vld [vmem:[%s3 + $0x18] sm:$0xff]
    %v297 = vld [vmem:[%s3 + $0x20] sm:$0xff]
    %v298 = vld [vmem:[%s3 + $0x28] sm:$0xff]
    %v299 = vld [vmem:[%s3 + $0x30] sm:$0xff]
    %v300 = vld [vmem:[%s3 + $0x38] sm:$0xff]
    %v301 = vld [vmem:[%s3 + $0x40] sm:$0xff]
    %v302 = vld [vmem:[%s3 + $0x48] sm:$0xff]
    %v303 = vld [vmem:[%s3 + $0x50] sm:$0xff]
    %v304 = vld [vmem:[%s3 + $0x58] sm:$0xff]
    %v305 = vld [vmem:[%s3 + $0x60] sm:$0xff]
    %v306 = vld [vmem:[%s3 + $0x68] sm:$0xff]
    %v307 = vld [vmem:[%s3 + $0x70] sm:$0xff]
    %v308 = vld [vmem:[%s3 + $0x78] sm:$0xff]
    %v309 = vmul.f32 %v261, %v293
    %v310 = vmul.f32 %v262, %v294
    %v311 = vmul.f32 %v263, %v295
    %v312 = vmul.f32 %v264, %v296
    %v313 = vmul.f32 %v265, %v297
    %v314 = vmul.f32 %v266, %v298
    %v315 = vmul.f32 %v267, %v299
    %v316 = vmul.f32 %v268, %v300
    %v317 = vmul.f32 %v269, %v301
    %v318 = vmul.f32 %v270, %v302
    %v319 = vmul.f32 %v271, %v303
    %v320 = vmul.f32 %v272, %v304
    %v321 = vmul.f32 %v273, %v305
    %v322 = vmul.f32 %v274, %v306
    %v323 = vmul.f32 %v275, %v307
    %v324 = vmul.f32 %v276, %v308
    %v325 = vadd.f32 %v277, %v309
    %v326 = vadd.f32 %v278, %v310
    %v327 = vadd.f32 %v279, %v311
    %v328 = vadd.f32 %v280, %v312
    %v329 = vadd.f32 %v281, %v313
    %v330 = vadd.f32 %v282, %v314
    %v331 = vadd.f32 %v283, %v315
    %v332 = vadd.f32 %v284, %v316
    %v333 = vadd.f32 %v285, %v317
    %v334 = vadd.f32 %v286, %v318
    %v335 = vadd.f32 %v287, %v319
    %v336 = vadd.f32 %v288, %v320
    %v337 = vadd.f32 %v289, %v321
    %v338 = vadd.f32 %v290, %v322
    %v339 = vadd.f32 %v291, %v323
    %v340 = vadd.f32 %v292, %v324
    %v341 = vld [vmem:[%s0] sm:$0xff]
    %342 = vmatprep.subr.mxu0 0.0
    %343 = vmatpush1.xpose.msra.mxu0 %v340
    %344 = vmatprep.subr.mxu0 0.0
    %345 = vmatpush1.xpose.msra.mxu0 %v339
    %346 = vmatprep.subr.mxu0 0.0
    %347 = vmatpush1.xpose.msra.mxu0 %v338
    %348 = vmatprep.subr.mxu0 0.0
    %349 = vmatpush1.xpose.msra.mxu0 %v337
    %350 = vmatprep.subr.mxu0 0.0
    %351 = vmatpush1.xpose.msra.mxu0 %v336
    %352 = vmatprep.subr.mxu0 0.0
    %353 = vmatpush1.xpose.msra.mxu0 %v335
    %354 = vmatprep.subr.mxu0 0.0
    %355 = vmatpush1.xpose.msra.mxu0 %v334
    %356 = vmatprep.subr.mxu0 0.0
    %357 = vmatpush1.xpose.msra.mxu0 %v333
    %358 = vmatprep.subr.mxu0 0.0
    %359 = vmatpush1.xpose.msra.mxu0 %v332
    %360 = vmatprep.subr.mxu0 0.0
    %361 = vmatpush1.xpose.msra.mxu0 %v331
    %362 = vmatprep.subr.mxu0 0.0
    %363 = vmatpush1.xpose.msra.mxu0 %v330
    %364 = vmatprep.subr.mxu0 0.0
    %365 = vmatpush1.xpose.msra.mxu0 %v329
    %366 = vmatprep.subr.mxu0 0.0
    %367 = vmatpush1.xpose.msra.mxu0 %v328
    %368 = vmatprep.subr.mxu0 0.0
    %369 = vmatpush1.xpose.msra.mxu0 %v327
    %370 = vmatprep.subr.mxu0 0.0
    %371 = vmatpush1.xpose.msra.mxu0 %v326
    %372 = vmatprep.subr.mxu0 0.0
    %373 = vmatpush1.xpose.msra.mxu0 %v325
    %374 = vmatprep.subr.mxu0 0.0
    %375 = vmatpush2.xpose.msra.mxu0 0.0
    %376 = vmatprep.subr.mxu0 0.0
    %377 = vmatpush2.xpose.msra.mxu0 0.0
    %378 = vmatprep.subr.mxu0 0.0
    %379 = vmatpush2.xpose.msra.mxu0 0.0
    %380 = vmatprep.subr.mxu0 0.0
    %381 = vmatpush2.xpose.msra.mxu0 0.0
    %382 = vmatprep.subr.mxu0 0.0
    %383 = vmatpush2.xpose.msra.mxu0 0.0
    %384 = vmatprep.subr.mxu0 0.0
    %385 = vmatpush2.xpose.msra.mxu0 0.0
    %386 = vmatprep.subr.mxu0 0.0
    %387 = vmatpush2.xpose.msra.mxu0 0.0
    %388 = vmatprep.subr.mxu0 0.0
    %389 = vmatpush2.xpose.msra.mxu0 0.0
    %390 = vmatprep.subr.mxu0 0.0
    %391 = vmatpush2.xpose.msra.mxu0 0.0
    %392 = vmatprep.subr.mxu0 0.0
    %393 = vmatpush2.xpose.msra.mxu0 0.0
    %394 = vmatprep.subr.mxu0 0.0
    %395 = vmatpush2.xpose.msra.mxu0 0.0
    %396 = vmatprep.subr.mxu0 0.0
    %397 = vmatpush2.xpose.msra.mxu0 0.0
    %398 = vmatprep.subr.mxu0 0.0
    %399 = vmatpush2.xpose.msra.mxu0 0.0
    %400 = vmatprep.subr.mxu0 0.0
    %401 = vmatpush2.xpose.msra.mxu0 0.0
    %402 = vmatprep.subr.mxu0 0.0
    %403 = vmatpush2.xpose.msra.mxu0 0.0
    %404 = vmatprep.subr.mxu0 0.0
    %405 = vmatpush2.xpose.msra.mxu0 0.0
    %406 = vmatprep.mubr.f32.mxu0 0.0
    %407 = vmatmul.mubr.f32.gmra.mxu0 %v341
    %v408 = vpop.f32.mrf.mxu0
    %v409 = vadd.f32 0.0, %v408
    %v410 = vpop.f32.mrf.mxu0
    %411 = vdwg.mxu0
    %p412 = scmp.eq.s32.totalorder 0, 0
    // Predicated region
    $region22: #{bayesian_linear.1} parent=1 // pred_check
      %p413 = pneg %p412
    $region23: #{bayesian_linear.1} parent=1 // pred_check_branch
      %415 = sbr.rel (%p413) target = $region25
    $region24: #{bayesian_linear.1} parent=1 // pred_region
      %416 = vst [vmem:[#allocation2] sm:$0xff] 0.0
    $region25: #{bayesian_linear.1} parent=1 // pred_fallthru
      _
    %p417 = scmp.lt.s32.totalorder 0, 0
    // Predicated region
    $region26: #{bayesian_linear.1} parent=1 // pred_check
      %p418 = pneg %p417
    $region27: #{bayesian_linear.1} parent=1 // pred_check_branch
      %420 = sbr.rel (%p418) target = $region29
    $region28: #{bayesian_linear.1} parent=1 // pred_region
      %v421 = vld [vmem:[#allocation2] sm:$0xff]
      %v422 = vadd.f32 %v421, %v409
      %423 = vst [vmem:[#allocation2] sm:$0xff] %v422
    $region29: #{bayesian_linear.1} parent=1 // pred_fallthru
      _
    // Predicated region
    $region30: #{bayesian_linear.1} parent=1 // pred_check
      %p424 = pneg %p412
    $region31: #{bayesian_linear.1} parent=1 // pred_check_branch
      %426 = sbr.rel (%p424) target = $region33
    $region32: #{bayesian_linear.1} parent=1 // pred_region
      %v427 = vld [vmem:[#allocation2] sm:$0xff]
      %v428 = vadd.f32 %v427, %v409
      %v429 = vld [vmem:[%s4] sm:$0x1]
      %v431 = vlaneseq
      %v432 = vshrl.u32 %v431, 7
      %v433 = vsub.s32 0, %v432
      %v434 = vrot.slane %v429, %v433
      %v436 = vadd.f32 %v428, %v434
      %437 = vst [vmem:[#allocation3] sm:$0xff] %v436
    $region33: #{bayesian_linear.1} parent=1 // pred_fallthru
      _
    // Predicated region
    $region34: #{bayesian_linear.1} parent=1 // pred_check
      _
    $region35: #{bayesian_linear.1} parent=1 // pred_check_branch
      %439 = sbr.rel (0) target = $region37
    $region36: #{bayesian_linear.1} parent=1 // pred_region
      %s441 = ssub.s32 128, 128
      %442 = vsyncadd [#allocation4], %s441
      %s444 = sshll.u32 [#allocation3], 4
      %s445 = int_to_ptr.vmem [resolvable:$true] %s444
      %447 = dma.vmem_to_hbm [thread:$0]  %s445, 128, %s5, [#allocation4]
    $region37: #{bayesian_linear.1} parent=1 // pred_fallthru
      _
    // Predicated region
    $region38: #{bayesian_linear.1} parent=1 // pred_check
      _
    $region39: #{bayesian_linear.1} parent=1 // pred_check_branch
      %449 = sbr.rel (0) target = $region41
    $region40: #{bayesian_linear.1} parent=1 // pred_region
      %450 = dma.done [#allocation4], 128
    $region41: #{bayesian_linear.1} parent=1 // pred_fallthru
      _
    %451 = vsyncpa [#allocation4], 1

</llo_original>
